<compile_context>
chip_gen: v5e
topology: v5e:2x2
jax: 0.10.0
libtpu: 0.0.40
codegen_flags: <defaults>
</compile_context>

<pallas_src>
import math
from functools import partial

import jax
import jax.numpy as jnp
from jax import lax
from jax.experimental import pallas as pl
from jax.experimental.pallas import tpu as pltpu


def _attn_head_kernel(x_ref, wq_ref, bq_ref, wk_ref, bk_ref, mask_ref, o_ref,
                      *, bt, seq_len, head_dim):
    S, H = seq_len, head_dim

    # Flattened projection matmul over all bt*S rows in this grid step.
    x = x_ref[...]                                                  # (bt*S, E)
    q = jnp.dot(x, wq_ref[...], preferred_element_type=jnp.float32) + bq_ref[...]  # (bt*S, H)
    k = jnp.dot(x, wk_ref[...], preferred_element_type=jnp.float32) + bk_ref[...]  # (bt*S, H)

    v = q.reshape(bt, S, H)          # module quirk: v = self.q_net(inputs)

    # Fold 1/sqrt(seq_len) (torch: / sqrt(q.shape[1]) == sqrt(S)) into q:
    # touches S*H elements instead of the S*S scores tile.
    scale = 1.0 / math.sqrt(seq_len)
    q_s = (q * scale).reshape(bt, S, H)
    k3 = k.reshape(bt, S, H)

    # Batched q @ k^T: contract the head dim directly (no explicit transpose).
    scores = lax.dot_general(
        q_s, k3,
        dimension_numbers=(((2,), (2,)), ((0,), (0,))),
        preferred_element_type=jnp.float32)                         # (bt, S, S)

    mask = mask_ref[...]                                            # (bt, 1, S)
    scores = jnp.where(mask == 0, jnp.float32(-1000000000.0), scores)

    # Softmax over keys; reciprocal on the EUP (approx) -- essentially free.
    m = jnp.max(scores, axis=-1, keepdims=True)
    e = jnp.exp(scores - m)
    attn = e * pl.reciprocal(jnp.sum(e, axis=-1, keepdims=True), approx=True)

    out = lax.dot_general(
        attn, v,
        dimension_numbers=(((2,), (1,)), ((0,), (0,))),
        preferred_element_type=jnp.float32)                         # (bt, S, H)

    # Lane-dense store: S*H == 128 lanes (vs. 16-wide masked stores).
    o_ref[...] = out.reshape(bt, 1, S * H)


def attention_head(x, wq, bq, wk, bk, attention_mask=None, *, batch_blocks=1):
    """x: (B, S, E) f32; wq/wk: (E, H); bq/bk: (H,); attention_mask: (B, S) or None.

    batch_blocks=1 is best on v5e/v6e (single TensorCore, one grid step).
    On v7x, batch_blocks=2 splits the batch over the chip's 2 TensorCores
    (requires B % batch_blocks == 0 and (B // batch_blocks) * S % 8 == 0).
    """
    B, S, E = x.shape
    H = wq.shape[1]
    assert B % batch_blocks == 0
    Bt = B // batch_blocks

    if attention_mask is None:
        attention_mask = jnp.ones((B, S), dtype=jnp.int32)
    mask3 = attention_mask.astype(jnp.int32).reshape(B, 1, S)

    x_flat = x.reshape(B * S, E)          # contiguous -> free reshape in XLA
    bq2 = bq.reshape(1, H)
    bk2 = bk.reshape(1, H)

    kernel = partial(_attn_head_kernel, bt=Bt, seq_len=S, head_dim=H)

    out = pl.pallas_call(
        kernel,
        out_shape=jax.ShapeDtypeStruct((B, 1, S * H), jnp.float32),
        grid_spec=pl.GridSpec(
            grid=(batch_blocks,),
            in_specs=[
                pl.BlockSpec((Bt * S, E), lambda b: (b, 0)),   # x (flattened)
                pl.BlockSpec((E, H), lambda b: (0, 0)),        # Wq
                pl.BlockSpec((1, H), lambda b: (0, 0)),        # bq
                pl.BlockSpec((E, H), lambda b: (0, 0)),        # Wk
                pl.BlockSpec((1, H), lambda b: (0, 0)),        # bk
                pl.BlockSpec((Bt, 1, S), lambda b: (b, 0, 0)), # mask
            ],
            out_specs=pl.BlockSpec((Bt, 1, S * H), lambda b: (b, 0, 0)),
        ),
        compiler_params=pltpu.CompilerParams(
            dimension_semantics=("parallel",)),
    )(x_flat, wq, bq2, wk, bk2, mask3)

    return out.reshape(B, S, H)           # contiguous -> free reshape in XLA


def _reference(x, wq, bq, wk, bk, attention_mask=None):
    q = x @ wq + bq
    k = x @ wk + bk
    v = q
    scores = jnp.einsum("bqh,bkh->bqk", q, k) / math.sqrt(q.shape[1])
    if attention_mask is not None:
        scores = jnp.where(attention_mask[:, None, :] == 0, -1e9, scores)
    attn = jax.nn.softmax(scores, axis=-1)
    return jnp.einsum("bqk,bkh->bqh", attn, v)


if __name__ == "__main__":
    B, S, E, H = 2, 8, 32, 16  # batch, seq, embed_dim, head_dim

    key = jax.random.PRNGKey(0)
    kx, kq, kbq, kk, kbk, kv, kbv, km = jax.random.split(key, 8)

    # Deterministic parameter init mimicking nn.Linear's uniform(-1/sqrt(E), 1/sqrt(E)).
    bound = 1.0 / math.sqrt(E)
    wq = jax.random.uniform(kq, (E, H), jnp.float32, -bound, bound)
    bq = jax.random.uniform(kbq, (H,), jnp.float32, -bound, bound)
    wk = jax.random.uniform(kk, (E, H), jnp.float32, -bound, bound)
    bk = jax.random.uniform(kbk, (H,), jnp.float32, -bound, bound)
    # v_net params exist in the module's __init__ but are unused in forward
    # (forward re-uses q_net for v); initialized here for shape parity only.
    wv = jax.random.uniform(kv, (E, H), jnp.float32, -bound, bound)
    bv = jax.random.uniform(kbv, (H,), jnp.float32, -bound, bound)

    x = jax.random.normal(kx, (B, S, E), jnp.float32)
    attention_mask = (jax.random.uniform(km, (B, S)) > 0.2).astype(jnp.int32)

    out = attention_head(x, wq, bq, wk, bk, attention_mask)
    out = jax.block_until_ready(out)

    ref = _reference(x, wq, bq, wk, bk, attention_mask)
    assert out.shape == (B, S, H)
    # Tolerance relaxed vs. 1e-5 because the softmax denominator uses the
    # EUP approximate reciprocal (≈2^-12 relative error).
    assert jnp.allclose(out, ref, atol=2e-3, rtol=2e-3), "mismatch vs reference"

    print("KERNEL_OK")
</pallas_src>

<mosaic_0001>
module attributes {stable_mosaic.version = 11 : i64} {
  func.func @_attn_head_kernel(%arg0: i32, %arg1: memref<16x32xf32, #tpu.memory_space<vmem>>, %arg2: memref<32x16xf32, #tpu.memory_space<vmem>>, %arg3: memref<1x16xf32, #tpu.memory_space<vmem>>, %arg4: memref<32x16xf32, #tpu.memory_space<vmem>>, %arg5: memref<1x16xf32, #tpu.memory_space<vmem>>, %arg6: memref<2x1x8xi32, #tpu.memory_space<vmem>>, %arg7: memref<2x1x128xf32, #tpu.memory_space<vmem>>) attributes {dimension_semantics = [#tpu.dimension_semantics<parallel>], iteration_bounds = array<i64: 1>, scalar_prefetch = 0 : i64, scratch_operands = 0 : i64, tpu.core_type = #tpu.core_type<tc>, window_params = [{transform_indices = @transform_0, window_bounds = array<i64: 16, 32>}, {pipeline_mode = #tpu.pipeline_mode<synchronous>, transform_indices = @transform_1, window_bounds = array<i64: 32, 16>}, {pipeline_mode = #tpu.pipeline_mode<synchronous>, transform_indices = @transform_2, window_bounds = array<i64: 1, 16>}, {pipeline_mode = #tpu.pipeline_mode<synchronous>, transform_indices = @transform_3, window_bounds = array<i64: 32, 16>}, {pipeline_mode = #tpu.pipeline_mode<synchronous>, transform_indices = @transform_4, window_bounds = array<i64: 1, 16>}, {transform_indices = @transform_5, window_bounds = array<i64: 2, 1, 8>}, {transform_indices = @transform_6, window_bounds = array<i64: 2, 1, 128>}]} {
    %c0 = arith.constant 0 : index
    %c0_0 = arith.constant 0 : index
    %0 = vector.load %arg1[%c0, %c0_0] : memref<16x32xf32, #tpu.memory_space<vmem>>, vector<16x32xf32>
    %c0_1 = arith.constant 0 : index
    %c0_2 = arith.constant 0 : index
    %1 = vector.load %arg2[%c0_1, %c0_2] : memref<32x16xf32, #tpu.memory_space<vmem>>, vector<32x16xf32>
    %cst = arith.constant dense<0.000000e+00> : vector<16x16xf32>
    %2 = tpu.matmul %0, %1, %cst {dimension_numbers = #tpu.dot_dimension_numbers<[1], [0], [0], [1], [0, 0, 1, 1], [], []>} : vector<16x32xf32>, vector<32x16xf32>, vector<16x16xf32> -> vector<16x16xf32>
    %c0_3 = arith.constant 0 : index
    %c0_4 = arith.constant 0 : index
    %3 = vector.load %arg3[%c0_3, %c0_4] : memref<1x16xf32, #tpu.memory_space<vmem>>, vector<1x16xf32>
    %4 = vector.broadcast %3 : vector<1x16xf32> to vector<16x16xf32>
    %5 = arith.addf %2, %4 : vector<16x16xf32>
    %c0_5 = arith.constant 0 : index
    %c0_6 = arith.constant 0 : index
    %6 = vector.load %arg4[%c0_5, %c0_6] : memref<32x16xf32, #tpu.memory_space<vmem>>, vector<32x16xf32>
    %cst_7 = arith.constant dense<0.000000e+00> : vector<16x16xf32>
    %7 = tpu.matmul %0, %6, %cst_7 {dimension_numbers = #tpu.dot_dimension_numbers<[1], [0], [0], [1], [0, 0, 1, 1], [], []>} : vector<16x32xf32>, vector<32x16xf32>, vector<16x16xf32> -> vector<16x16xf32>
    %c0_8 = arith.constant 0 : index
    %c0_9 = arith.constant 0 : index
    %8 = vector.load %arg5[%c0_8, %c0_9] : memref<1x16xf32, #tpu.memory_space<vmem>>, vector<1x16xf32>
    %9 = vector.broadcast %8 : vector<1x16xf32> to vector<16x16xf32>
    %10 = arith.addf %7, %9 : vector<16x16xf32>
    %11 = vector.shape_cast %5 : vector<16x16xf32> to vector<2x8x16xf32>
    %cst_10 = arith.constant 0.353553385 : f32
    %12 = vector.broadcast %cst_10 : f32 to vector<16x16xf32>
    %13 = arith.mulf %5, %12 : vector<16x16xf32>
    %14 = vector.shape_cast %13 : vector<16x16xf32> to vector<2x8x16xf32>
    %15 = vector.shape_cast %10 : vector<16x16xf32> to vector<2x8x16xf32>
    %cst_11 = arith.constant dense<0.000000e+00> : vector<2x8x8xf32>
    %16 = tpu.matmul %14, %15, %cst_11 {dimension_numbers = #tpu.dot_dimension_numbers<[2], [2], [1], [1], [0, 0, 0, 1, 1, 1], [0], [0]>} : vector<2x8x16xf32>, vector<2x8x16xf32>, vector<2x8x8xf32> -> vector<2x8x8xf32>
    %c0_12 = arith.constant 0 : index
    %c0_13 = arith.constant 0 : index
    %c0_14 = arith.constant 0 : index
    %17 = vector.load %arg6[%c0_12, %c0_13, %c0_14] : memref<2x1x8xi32, #tpu.memory_space<vmem>>, vector<2x1x8xi32>
    %c0_i32 = arith.constant 0 : i32
    %18 = vector.broadcast %c0_i32 : i32 to vector<2x1x8xi32>
    %19 = arith.cmpi eq, %17, %18 : vector<2x1x8xi32>
    %cst_15 = arith.constant -1.000000e+09 : f32
    %20 = vector.shape_cast %19 : vector<2x1x8xi1> to vector<2x1x8xi1>
    %21 = vector.broadcast %20 : vector<2x1x8xi1> to vector<2x8x8xi1>
    %22 = vector.broadcast %cst_15 : f32 to vector<2x8x8xf32>
    %23 = arith.select %21, %22, %16 : vector<2x8x8xi1>, vector<2x8x8xf32>
    %cst_16 = arith.constant dense<0xFF800000> : vector<2x8xf32>
    %24 = vector.multi_reduction <maximumf>, %23, %cst_16 [2] : vector<2x8x8xf32> to vector<2x8xf32>
    %25 = vector.shape_cast %24 : vector<2x8xf32> to vector<2x8x1xf32>
    %26 = vector.broadcast %25 : vector<2x8x1xf32> to vector<2x8x8xf32>
    %27 = arith.subf %23, %26 : vector<2x8x8xf32>
    %28 = math.exp %27 : vector<2x8x8xf32>
    %cst_17 = arith.constant dense<0.000000e+00> : vector<2x8xf32>
    %29 = vector.multi_reduction <add>, %28, %cst_17 [2] : vector<2x8x8xf32> to vector<2x8xf32>
    %30 = vector.shape_cast %29 : vector<2x8xf32> to vector<2x8x1xf32>
    %31 = tpu.reciprocal %30 {approx = true} : vector<2x8x1xf32> -> vector<2x8x1xf32>
    %32 = vector.broadcast %31 : vector<2x8x1xf32> to vector<2x8x8xf32>
    %33 = arith.mulf %28, %32 : vector<2x8x8xf32>
    %cst_18 = arith.constant dense<0.000000e+00> : vector<2x8x16xf32>
    %34 = tpu.matmul %33, %11, %cst_18 {dimension_numbers = #tpu.dot_dimension_numbers<[2], [1], [1], [2], [0, 0, 0, 1, 1, 2], [0], [0]>} : vector<2x8x8xf32>, vector<2x8x16xf32>, vector<2x8x16xf32> -> vector<2x8x16xf32>
    %35 = vector.shape_cast %34 : vector<2x8x16xf32> to vector<2x1x128xf32>
    %c0_19 = arith.constant 0 : index
    %c0_20 = arith.constant 0 : index
    %c0_21 = arith.constant 0 : index
    %36 = vector.load %arg7[%c0_19, %c0_20, %c0_21] : memref<2x1x128xf32, #tpu.memory_space<vmem>>, vector<2x1x128xf32>
    tpu.vector_store %arg7[%c0_19, %c0_20, %c0_21], %35 {strides = array<i32>} : memref<2x1x128xf32, #tpu.memory_space<vmem>>, vector<2x1x128xf32>,
    return
  }
  func.func @transform_0(%arg0: i32) -> (i32, i32) {
    %c0_i32 = arith.constant 0 : i32
    %c0_i32_0 = arith.constant 0 : i32
    return %arg0, %c0_i32 : i32, i32
  }
  func.func @transform_1(%arg0: i32) -> (i32, i32) {
    %c0_i32 = arith.constant 0 : i32
    %c0_i32_0 = arith.constant 0 : i32
    %c0_i32_1 = arith.constant 0 : i32
    return %c0_i32, %c0_i32_0 : i32, i32
  }
  func.func @transform_2(%arg0: i32) -> (i32, i32) {
    %c0_i32 = arith.constant 0 : i32
    %c0_i32_0 = arith.constant 0 : i32
    %c0_i32_1 = arith.constant 0 : i32
    return %c0_i32, %c0_i32_0 : i32, i32
  }
  func.func @transform_3(%arg0: i32) -> (i32, i32) {
    %c0_i32 = arith.constant 0 : i32
    %c0_i32_0 = arith.constant 0 : i32
    %c0_i32_1 = arith.constant 0 : i32
    return %c0_i32, %c0_i32_0 : i32, i32
  }
  func.func @transform_4(%arg0: i32) -> (i32, i32) {
    %c0_i32 = arith.constant 0 : i32
    %c0_i32_0 = arith.constant 0 : i32
    %c0_i32_1 = arith.constant 0 : i32
    return %c0_i32, %c0_i32_0 : i32, i32
  }
  func.func @transform_5(%arg0: i32) -> (i32, i32, i32) {
    %c0_i32 = arith.constant 0 : i32
    %c0_i32_0 = arith.constant 0 : i32
    %c0_i32_1 = arith.constant 0 : i32
    return %arg0, %c0_i32, %c0_i32_0 : i32, i32, i32
  }
  func.func @transform_6(%arg0: i32) -> (i32, i32, i32) {
    %c0_i32 = arith.constant 0 : i32
    %c0_i32_0 = arith.constant 0 : i32
    %c0_i32_1 = arith.constant 0 : i32
    return %arg0, %c0_i32, %c0_i32_0 : i32, i32, i32
  }
}

</mosaic_0001>

<llo_original>
// kernel: tpu_custom_call.1
$region0: #{tpu_custom_call.1}
  #allocation0 [shape = 'u32[]', space=smem, size = 0x4, offset = 0x4, fixed_abs, tag = 'smem constant byte address 0x4 - core index']
  #allocation1 [shape = 'u32[72,128]{1,0:T(1,128)}', space=vmem, size = 0x9000, scoped, tag = 'internal scratch']
  %s0 = inlined_call_operand.vmem [shape: f32[16,32], index: 0, kind: input, shape index: {}]
  %s1 = inlined_call_operand.vmem [shape: f32[32,16], index: 1, kind: input, shape index: {}]
  %s2 = inlined_call_operand.vmem [shape: f32[1,16], index: 2, kind: input, shape index: {}]
  %s3 = inlined_call_operand.vmem [shape: f32[32,16], index: 3, kind: input, shape index: {}]
  %s4 = inlined_call_operand.vmem [shape: f32[1,16], index: 4, kind: input, shape index: {}]
  %s5 = inlined_call_operand.vmem [shape: s32[2,1,8], index: 5, kind: input, shape index: {}]
  %s6 = inlined_call_operand.hbm [shape: f32[2,1,128], index: 6, kind: output, shape index: {}]
  %s7 = sld [smem:[#allocation0]]
  $region34: #{tpu_custom_call.1} parent=0
    _
  %s9 = ssub.s32 1, %s7
  %s10 = scalar_select 0, %s9, %s7
  $region1: #{tpu_custom_call.1} parent=0
    #allocation2 [shape = 'u8[1024]{0}', space=vmem, size = 0x400, scoped, tag = 'output window, operand 0, single buffered']
    #allocation3 [shape = 's32[1]{0}', space=sflag, size = 0x4, scoped, tag = 'scoped memory for tpu_custom_call.1']
    %11 = vsyncpa [#allocation3], 0
    // Predicated region
    $region2: #{tpu_custom_call.1} parent=1 // pred_check
      _
    $region3: #{tpu_custom_call.1} parent=1 // pred_check_branch
      %13 = sbr.rel (0) target = $region5
    $region4: #{tpu_custom_call.1} parent=1 // pred_region
      _
    $region5: #{tpu_custom_call.1} parent=1 // pred_fallthru
      _
    // Predicated region
    $region6: #{tpu_custom_call.1} parent=1 // pred_check
      _
    $region7: #{tpu_custom_call.1} parent=1 // pred_check_branch
      %15 = sbr.rel (0) target = $region9
    $region8: #{tpu_custom_call.1} parent=1 // pred_region
      _
    $region9: #{tpu_custom_call.1} parent=1 // pred_fallthru
      _
    // Predicated region
    $region10: #{tpu_custom_call.1} parent=1 // pred_check
      _
    $region11: #{tpu_custom_call.1} parent=1 // pred_check_branch
      %17 = sbr.rel (0) target = $region13
    $region12: #{tpu_custom_call.1} parent=1 // pred_region
      _
    $region13: #{tpu_custom_call.1} parent=1 // pred_fallthru
      _
    // Predicated region
    $region14: #{tpu_custom_call.1} parent=1 // pred_check
      _
    $region15: #{tpu_custom_call.1} parent=1 // pred_check_branch
      %19 = sbr.rel (0) target = $region17
    $region16: #{tpu_custom_call.1} parent=1 // pred_region
      _
    $region17: #{tpu_custom_call.1} parent=1 // pred_fallthru
      _
    // Predicated region
    $region18: #{tpu_custom_call.1} parent=1 // pred_check
      _
    $region19: #{tpu_custom_call.1} parent=1 // pred_check_branch
      %21 = sbr.rel (0) target = $region21
    $region20: #{tpu_custom_call.1} parent=1 // pred_region
      _
    $region21: #{tpu_custom_call.1} parent=1 // pred_fallthru
      _
    // Predicated region
    $region22: #{tpu_custom_call.1} parent=1 // pred_check
      _
    $region23: #{tpu_custom_call.1} parent=1 // pred_check_branch
      %23 = sbr.rel (0) target = $region25
    $region24: #{tpu_custom_call.1} parent=1 // pred_region
      _
    $region25: #{tpu_custom_call.1} parent=1 // pred_fallthru
      _
    %v24 = vld [vmem:[%s0] sm:$0xff]
    %v25 = vld [vmem:[%s0 + $0x8] sm:$0xff]
    %v26 = vld [vmem:[%s1] sm:$0xff]
    %v27 = vld [vmem:[%s1 + $0x8] sm:$0xff]
    %v28 = vld [vmem:[%s1 + $0x10] sm:$0xff]
    %v29 = vld [vmem:[%s1 + $0x18] sm:$0xff]
    %v30 = vld [vmem:[%s2] sm:$0x1]
    %v32 = vperm.slane %v30, 0
    %vm34 = vcmask 261120
    %v36 = vsel %vm34, %v24, 0
    %v39 = vsel %vm34, %v25, 0
    %41 = vmatpush.msra.mxu0 0.0
    %42 = vmatpush.msra.mxu0 0.0
    %43 = vmatpush.msra.mxu0 0.0
    %44 = vmatpush.msra.mxu0 0.0
    %45 = vmatpush.msra.mxu0 0.0
    %46 = vmatpush.msra.mxu0 0.0
    %47 = vmatpush.msra.mxu0 0.0
    %48 = vmatpush.msra.mxu0 0.0
    %49 = vmatpush.msra.mxu0 0.0
    %50 = vmatpush.msra.mxu0 0.0
    %51 = vmatpush.msra.mxu0 0.0
    %52 = vmatpush.msra.mxu0 0.0
    %53 = vmatpush.msra.mxu0 %v29
    %54 = vmatpush.msra.mxu0 %v28
    %55 = vmatpush.msra.mxu0 %v27
    %56 = vmatpush.msra.mxu0 %v26
    %57 = vmatmul.f32.gmra.mxu0 %v36
    %v58 = vpop.f32.mrf.mxu0
    %v59 = vadd.f32 %v32, %v58
    %60 = vmatmul.f32.gmra.mxu0 %v39
    %v61 = vpop.f32.mrf.mxu0
    %v62 = vadd.f32 %v32, %v61
    %63 = vdwg.mxu0
    %v64 = vld [vmem:[%s3] sm:$0xff]
    %v65 = vld [vmem:[%s3 + $0x8] sm:$0xff]
    %v66 = vld [vmem:[%s3 + $0x10] sm:$0xff]
    %v67 = vld [vmem:[%s3 + $0x18] sm:$0xff]
    %v68 = vld [vmem:[%s4] sm:$0x1]
    %v70 = vperm.slane %v68, 0
    %72 = vmatpush.msra.mxu0 0.0
    %73 = vmatpush.msra.mxu0 0.0
    %74 = vmatpush.msra.mxu0 0.0
    %75 = vmatpush.msra.mxu0 0.0
    %76 = vmatpush.msra.mxu0 0.0
    %77 = vmatpush.msra.mxu0 0.0
    %78 = vmatpush.msra.mxu0 0.0
    %79 = vmatpush.msra.mxu0 0.0
    %80 = vmatpush.msra.mxu0 0.0
    %81 = vmatpush.msra.mxu0 0.0
    %82 = vmatpush.msra.mxu0 0.0
    %83 = vmatpush.msra.mxu0 0.0
    %84 = vmatpush.msra.mxu0 %v67
    %85 = vmatpush.msra.mxu0 %v66
    %86 = vmatpush.msra.mxu0 %v65
    %87 = vmatpush.msra.mxu0 %v64
    %88 = vmatmul.f32.gmra.mxu0 %v36
    %v89 = vpop.f32.mrf.mxu0
    %v90 = vadd.f32 %v70, %v89
    %91 = vmatmul.f32.gmra.mxu0 %v39
    %v92 = vpop.f32.mrf.mxu0
    %v93 = vadd.f32 %v70, %v92
    %94 = vdwg.mxu0
    %v95 = vmul.f32 %v59, 0.35355338
    %v96 = vmul.f32 %v62, 0.35355338
    %vm97 = vcmask 130048
    %v99 = vsel %vm97, %v95, 0
    %v102 = vsel %vm97, %v90, 0
    %104 = vmatpush.xpose.msra.mxu0 0.0
    %105 = vmatpush.xpose.msra.mxu0 0.0
    %106 = vmatpush.xpose.msra.mxu0 0.0
    %107 = vmatpush.xpose.msra.mxu0 0.0
    %108 = vmatpush.xpose.msra.mxu0 0.0
    %109 = vmatpush.xpose.msra.mxu0 0.0
    %110 = vmatpush.xpose.msra.mxu0 0.0
    %111 = vmatpush.xpose.msra.mxu0 0.0
    %112 = vmatpush.xpose.msra.mxu0 0.0
    %113 = vmatpush.xpose.msra.mxu0 0.0
    %114 = vmatpush.xpose.msra.mxu0 0.0
    %115 = vmatpush.xpose.msra.mxu0 0.0
    %116 = vmatpush.xpose.msra.mxu0 0.0
    %117 = vmatpush.xpose.msra.mxu0 0.0
    %118 = vmatpush.xpose.msra.mxu0 0.0
    %119 = vmatpush.xpose.msra.mxu0 %v102
    %120 = vmatmul.f32.gmra.mxu0 %v99
    %v121 = vpop.f32.mrf.mxu0
    %v122 = vadd.f32 0.0, %v121
    %123 = vdwg.mxu0
    %v125 = vsel %vm97, %v96, 0
    %v128 = vsel %vm97, %v93, 0
    %130 = vmatpush.xpose.msra.mxu0 0.0
    %131 = vmatpush.xpose.msra.mxu0 0.0
    %132 = vmatpush.xpose.msra.mxu0 0.0
    %133 = vmatpush.xpose.msra.mxu0 0.0
    %134 = vmatpush.xpose.msra.mxu0 0.0
    %135 = vmatpush.xpose.msra.mxu0 0.0
    %136 = vmatpush.xpose.msra.mxu0 0.0
    %137 = vmatpush.xpose.msra.mxu0 0.0
    %138 = vmatpush.xpose.msra.mxu0 0.0
    %139 = vmatpush.xpose.msra.mxu0 0.0
    %140 = vmatpush.xpose.msra.mxu0 0.0
    %141 = vmatpush.xpose.msra.mxu0 0.0
    %142 = vmatpush.xpose.msra.mxu0 0.0
    %143 = vmatpush.xpose.msra.mxu0 0.0
    %144 = vmatpush.xpose.msra.mxu0 0.0
    %145 = vmatpush.xpose.msra.mxu0 %v128
    %146 = vmatmul.f32.gmra.mxu0 %v125
    %v147 = vpop.f32.mrf.mxu0
    %v148 = vadd.f32 0.0, %v147
    %149 = vdwg.mxu0
    %v150 = vld [vmem:[%s5] sm:$0x1]
    %v151 = vld [vmem:[%s5 + $0x1] sm:$0x1]
    %vm152 = vcmp.eq.s32.totalorder %v150, 0
    %vm153 = vcmp.eq.s32.totalorder %v151, 0
    %v154 = vsel %vm152, 1, 0
    %v155 = vsel %vm153, 1, 0
    %v156 = vperm.slane %v154, 0
    %v157 = vperm.slane %v155, 0
    %vm158 = vcmp.eq.s32.totalorder %v156, 1
    %vm159 = vcmp.eq.s32.totalorder %v157, 1
    %v160 = vsel %vm158, -1e+09, %v122
    %v161 = vsel %vm159, -1e+09, %v148
    %vm162 = vcmask 64512
    %v163 = vsel %vm162, %v160, -inf
    %164 = vmax.xlane.f32.xlu0 %v163
    %v165 = vpop.xlane.xlu0 %164
    %v166 = vsel %vm162, %v161, -inf
    %167 = vmax.xlane.f32.xlu0 %v166
    %v168 = vpop.xlane.xlu0 %167
    %v169 = vsub.f32 %v160, %v165
    %v170 = vsub.f32 %v161, %v168
    %v171 = vmul.f32 %v169, 1.442695
    %v172 = vpow.pop %v171
    %v173 = vmul.f32 %v170, 1.442695
    %v174 = vpow.pop %v173
    %v175 = vsel %vm162, %v172, 0.0
    %176 = vadd.xlane.f32.xlu0 %v175
    %v177 = vpop.xlane.xlu0 %176
    %v178 = vsel %vm162, %v174, 0.0
    %179 = vadd.xlane.f32.xlu0 %v178
    %v180 = vpop.xlane.xlu0 %179
    %v181 = vrcp.pop %v177
    %v182 = vrcp.pop %v180
    %v183 = vmul.f32 %v172, %v181
    %v184 = vmul.f32 %v174, %v182
    %v186 = vsel %vm162, %v183, 0
    %188 = vmatpush.msra.mxu0 0.0
    %189 = vmatpush.msra.mxu0 0.0
    %190 = vmatpush.msra.mxu0 0.0
    %191 = vmatpush.msra.mxu0 0.0
    %192 = vmatpush.msra.mxu0 0.0
    %193 = vmatpush.msra.mxu0 0.0
    %194 = vmatpush.msra.mxu0 0.0
    %195 = vmatpush.msra.mxu0 0.0
    %196 = vmatpush.msra.mxu0 0.0
    %197 = vmatpush.msra.mxu0 0.0
    %198 = vmatpush.msra.mxu0 0.0
    %199 = vmatpush.msra.mxu0 0.0
    %200 = vmatpush.msra.mxu0 0.0
    %201 = vmatpush.msra.mxu0 0.0
    %202 = vmatpush.msra.mxu0 0.0
    %203 = vmatpush.msra.mxu0 %v59
    %204 = vmatmul.f32.gmra.mxu0 %v186
    %v205 = vpop.f32.mrf.mxu0
    %v206 = vadd.f32 0.0, %v205
    %207 = vdwg.mxu0
    %v209 = vsel %vm162, %v184, 0
    %211 = vmatpush.msra.mxu0 0.0
    %212 = vmatpush.msra.mxu0 0.0
    %213 = vmatpush.msra.mxu0 0.0
    %214 = vmatpush.msra.mxu0 0.0
    %215 = vmatpush.msra.mxu0 0.0
    %216 = vmatpush.msra.mxu0 0.0
    %217 = vmatpush.msra.mxu0 0.0
    %218 = vmatpush.msra.mxu0 0.0
    %219 = vmatpush.msra.mxu0 0.0
    %220 = vmatpush.msra.mxu0 0.0
    %221 = vmatpush.msra.mxu0 0.0
    %222 = vmatpush.msra.mxu0 0.0
    %223 = vmatpush.msra.mxu0 0.0
    %224 = vmatpush.msra.mxu0 0.0
    %225 = vmatpush.msra.mxu0 0.0
    %226 = vmatpush.msra.mxu0 %v62
    %227 = vmatmul.f32.gmra.mxu0 %v209
    %v228 = vpop.f32.mrf.mxu0
    %v229 = vadd.f32 0.0, %v228
    %230 = vdwg.mxu0
    %v231 = vrot.slane %v206, 4
    %vm232 = vcmask 1047556
    %v233 = vsel %vm232, 0.0, %v231
    %v235 = vunpack.c.l.s4 1983009808
    %v236 = vunpack.c.0.s8 %v235
    %v237 = vperm.slane %v206, %v236
    %v239 = vunpack.c.l.s4 1983009808
    %v240 = vunpack.c.0.s8 %v239
    %v241 = vperm.slane %v233, %v240
    %v242 = vrot.slane %v237, 4
    %v243 = vsel %vm232, 0.0, %v242
    %v245 = vunpack.c.l.s4 1934713408
    %v246 = vunpack.c.0.s8 %v245
    %v247 = vperm.slane %v237, %v246
    %v249 = vunpack.c.l.s4 1934713408
    %v250 = vunpack.c.0.s8 %v249
    %v251 = vperm.slane %v243, %v250
    %v252 = vrot.slane %v241, 4
    %v253 = vsel %vm232, 0.0, %v252
    %v255 = vunpack.c.l.s4 1934713408
    %v256 = vunpack.c.0.s8 %v255
    %v257 = vperm.slane %v241, %v256
    %v259 = vunpack.c.l.s4 1934713408
    %v260 = vunpack.c.0.s8 %v259
    %v261 = vperm.slane %v253, %v260
    %v262 = vrot.slane %v247, 4
    %v263 = vsel %vm232, 0.0, %v262
    %v264 = vrot.slane %v251, 4
    %v265 = vsel %vm232, 0.0, %v264
    %v266 = vrot.slane %v257, 4
    %v267 = vsel %vm232, 0.0, %v266
    %v268 = vrot.slane %v261, 4
    %v269 = vsel %vm232, 0.0, %v268
    %v270 = vrot.slane %v229, 4
    %v271 = vsel %vm232, 0.0, %v270
    %v273 = vunpack.c.l.s4 1983009808
    %v274 = vunpack.c.0.s8 %v273
    %v275 = vperm.slane %v229, %v274
    %v277 = vunpack.c.l.s4 1983009808
    %v278 = vunpack.c.0.s8 %v277
    %v279 = vperm.slane %v271, %v278
    %v280 = vrot.slane %v275, 4
    %v281 = vsel %vm232, 0.0, %v280
    %v283 = vunpack.c.l.s4 1934713408
    %v284 = vunpack.c.0.s8 %v283
    %v285 = vperm.slane %v275, %v284
    %v287 = vunpack.c.l.s4 1934713408
    %v288 = vunpack.c.0.s8 %v287
    %v289 = vperm.slane %v281, %v288
    %v290 = vrot.slane %v279, 4
    %v291 = vsel %vm232, 0.0, %v290
    %v293 = vunpack.c.l.s4 1934713408
    %v294 = vunpack.c.0.s8 %v293
    %v295 = vperm.slane %v279, %v294
    %v297 = vunpack.c.l.s4 1934713408
    %v298 = vunpack.c.0.s8 %v297
    %v299 = vperm.slane %v291, %v298
    %v300 = vrot.slane %v285, 4
    %v301 = vsel %vm232, 0.0, %v300
    %v302 = vrot.slane %v289, 4
    %v303 = vsel %vm232, 0.0, %v302
    %v304 = vrot.slane %v295, 4
    %v305 = vsel %vm232, 0.0, %v304
    %v306 = vrot.slane %v299, 4
    %v307 = vsel %vm232, 0.0, %v306
    %310 = vrot.lane.b32.xlu0 %v263, 16
    %v311 = vpop.permute.xlu0 %310
    %312 = vrot.lane.b32.xlu0 %v301, 16
    %v313 = vpop.permute.xlu0 %312
    %318 = vrot.lane.b32.xlu0 %v251, 32
    %v319 = vpop.permute.xlu0 %318
    %320 = vrot.lane.b32.xlu0 %v289, 32
    %v321 = vpop.permute.xlu0 %320
    %326 = vrot.lane.b32.xlu0 %v265, 48
    %v327 = vpop.permute.xlu0 %326
    %328 = vrot.lane.b32.xlu0 %v303, 48
    %v329 = vpop.permute.xlu0 %328
    %334 = vrot.lane.b32.xlu0 %v257, 64
    %v335 = vpop.permute.xlu0 %334
    %336 = vrot.lane.b32.xlu0 %v295, 64
    %v337 = vpop.permute.xlu0 %336
    %342 = vrot.lane.b32.xlu0 %v267, 80
    %v343 = vpop.permute.xlu0 %342
    %344 = vrot.lane.b32.xlu0 %v305, 80
    %v345 = vpop.permute.xlu0 %344
    %350 = vrot.lane.b32.xlu0 %v261, 96
    %v351 = vpop.permute.xlu0 %350
    %352 = vrot.lane.b32.xlu0 %v299, 96
    %v353 = vpop.permute.xlu0 %352
    %358 = vrot.lane.b32.xlu0 %v269, 112
    %v359 = vpop.permute.xlu0 %358
    %360 = vrot.lane.b32.xlu0 %v307, 112
    %v361 = vpop.permute.xlu0 %360
    %v364 = vsel %vm97, %v247, %v311
    %v365 = vsel %vm97, %v285, %v313
    %v366 = vsel %vm34, %v364, %v319
    %v367 = vsel %vm34, %v365, %v321
    %vm368 = vcmask 392192
    %v369 = vsel %vm368, %v366, %v327
    %v370 = vsel %vm368, %v367, %v329
    %vm371 = vcmask 523264
    %v372 = vsel %vm371, %v369, %v335
    %v373 = vsel %vm371, %v370, %v337
    %vm374 = vcmask 654336
    %v375 = vsel %vm374, %v372, %v343
    %v376 = vsel %vm374, %v373, %v345
    %vm377 = vcmask 785408
    %v378 = vsel %vm377, %v375, %v351
    %v379 = vsel %vm377, %v376, %v353
    %vm380 = vcmask 916480
    %v381 = vsel %vm380, %v378, %v359
    %v382 = vsel %vm380, %v379, %v361
    %383 = vst [vmem:[#allocation2] sm:$0x1] %v381
    %384 = vst [vmem:[#allocation2 + $0x1] sm:$0x1] %v382
    // Predicated region
    $region26: #{tpu_custom_call.1} parent=1 // pred_check
      _
    $region27: #{tpu_custom_call.1} parent=1 // pred_check_branch
      %386 = sbr.rel (0) target = $region29
    $region28: #{tpu_custom_call.1} parent=1 // pred_region
      %388 = vsyncadd [#allocation3], 0
      %s389 = sshll.u32 [#allocation2], 4
      %s390 = int_to_ptr.vmem [resolvable:$true] %s389
      %s391 = sshll.u32 %s6, 4
      %s392 = int_to_ptr.hbm [resolvable:$true] %s391
      %397 = dma.vmem_to_hbm [thread:$0]  %s390, 32, %s392, [#allocation3], 16, 16, 1
    $region29: #{tpu_custom_call.1} parent=1 // pred_fallthru
      _
    // Predicated region
    $region30: #{tpu_custom_call.1} parent=1 // pred_check
      _
    $region31: #{tpu_custom_call.1} parent=1 // pred_check_branch
      %399 = sbr.rel (0) target = $region33
    $region32: #{tpu_custom_call.1} parent=1 // pred_region
      %401 = dma.done [#allocation3], 32
    $region33: #{tpu_custom_call.1} parent=1 // pred_fallthru
      _
    %402 = vsyncpa [#allocation3], 1

</llo_original>
